<compile_context>
chip_gen: v7x
topology: tpu7x:2x2x1
jax: 0.10.0
libtpu: 0.0.40
codegen_flags: <defaults>
</compile_context>

<pallas_src>
import functools

import jax
import jax.numpy as jnp
from jax import lax
from jax.experimental import pallas as pl
from jax.experimental.pallas import tpu as pltpu


# ---------------------------------------------------------------------------
# Pallas kernel: the sequential bidirectional recurrence.
# ---------------------------------------------------------------------------
def bilstm_recurrence_kernel(xg_ref, whh_ref, out_ref, *, hidden, unroll):
    """xg_ref:  (T, Bt, 8H)  precomputed x-projection (+bias), time-aligned.
    whh_ref: (2H, 8H)      fused block-structured recurrent weight.
    out_ref: (T, Bt, 2H)   bidirectional hidden states, time-major."""
    H = hidden
    T = xg_ref.shape[0]
    Bt = xg_ref.shape[1]

    whh = whh_ref[...]                       # hoisted out of the time loop

    h0 = jnp.zeros((Bt, 2 * H), jnp.float32)
    c0 = jnp.zeros((Bt, 2 * H), jnp.float32)

    def step(t, carry):
        h_cat, c_cat = carry                 # (Bt, 2H) each: [fwd | bwd], in vregs
        # One fused MXU matmul per step covers both directions; the hoisted
        # input projection slab (already includes biases) is just added.
        gates = jnp.dot(h_cat, whh, preferred_element_type=jnp.float32) + xg_ref[t]
        # columns: [ i_f i_b | f_f f_b | o_f o_b | g_f g_b ]
        sig = jax.nn.sigmoid(gates[:, : 6 * H])          # i, f, o in one EUP pass
        i_cat = sig[:, : 2 * H]
        f_cat = sig[:, 2 * H: 4 * H]
        o_cat = sig[:, 4 * H:]
        g_cat = jnp.tanh(gates[:, 6 * H:])
        c_new = f_cat * c_cat + i_cat * g_cat
        h_new = o_cat * jnp.tanh(c_new)
        # Forward hidden belongs to time t, backward hidden to time T-1-t.
        out_ref[t, :, :H] = h_new[:, :H].astype(out_ref.dtype)
        out_ref[T - 1 - t, :, H:] = h_new[:, H:].astype(out_ref.dtype)
        return h_new, c_new

    lax.fori_loop(0, T, step, (h0, c0), unroll=unroll)


# ---------------------------------------------------------------------------
# Weight / projection fusion helpers (gate-major, direction-minor layout).
# PyTorch gate order is (i, f, g, o); we permute to (i, f, o, g) so all
# sigmoid gates are contiguous.
# ---------------------------------------------------------------------------
_GATE_PERM = (0, 1, 3, 2)                     # i, f, o, g


def _interleave_gates(a_f, a_b, H):
    """Interleave two (..., 4H) gate tensors into (..., 8H) fused layout."""
    lead = a_f.shape[:-1]
    a_f = a_f.reshape(*lead, 4, H)[..., _GATE_PERM, :]
    a_b = a_b.reshape(*lead, 4, H)[..., _GATE_PERM, :]
    return jnp.stack([a_f, a_b], axis=-2).reshape(*lead, 8 * H)


def _fuse_recurrent_weights(whh_f, whh_b, H):
    """Build the (2H, 8H) block-structured recurrent weight from two (H, 4H)."""
    z = jnp.zeros((H, 4, H), whh_f.dtype)
    wf = whh_f.reshape(H, 4, H)[:, _GATE_PERM, :]
    wb = whh_b.reshape(H, 4, H)[:, _GATE_PERM, :]
    top = jnp.concatenate([wf, z], axis=0)    # rows 0:H  -> fwd h feeds fwd gates
    bot = jnp.concatenate([z, wb], axis=0)    # rows H:2H -> bwd h feeds bwd gates
    return jnp.stack([top, bot], axis=2).reshape(2 * H, 8 * H)


# ---------------------------------------------------------------------------
# Forward wrapper.
# ---------------------------------------------------------------------------
@functools.partial(jax.jit, static_argnames=("batch_tile",))
def subj_lstm_forward(inputs, params, batch_tile=None):
    """inputs: (B, T, E) batch of equal-length sequences.
    Returns (B, T, 2H) batch-first, matching pad_packed_sequence(batch_first=True)."""
    B, T, E = inputs.shape
    H = params["whh_f"].shape[0]             # per-direction hidden size

    bt = B if batch_tile is None else batch_tile
    assert B % bt == 0 and (bt == B or bt % 8 == 0), "batch tile must divide B"

    x = jnp.transpose(inputs, (1, 0, 2))     # (T, B, E) time-major

    # --- hoisted, data-parallel input projection (one big matmul per dir) ---
    # The backward projection is computed on time-reversed x so that loop step
    # t can consume a single time-aligned (B, 8H) slab for both directions.
    proj_f = jnp.einsum("tbe,eg->tbg", x, params["wih_f"])         # (T, B, 4H)
    proj_b = jnp.einsum("tbe,eg->tbg", x[::-1], params["wih_b"])   # (T, B, 4H)
    bias = _interleave_gates(params["b_f"], params["b_b"], H)      # (8H,)
    xg = _interleave_gates(proj_f, proj_b, H) + bias               # (T, B, 8H)

    whh_fused = _fuse_recurrent_weights(params["whh_f"], params["whh_b"], H)

    # VMEM budget: double-buffered input/output blocks + weights, with slack.
    block_bytes = 4 * (T * bt * 8 * H + T * bt * 2 * H + 2 * H * 8 * H)
    vmem_limit = min(max(4 * block_bytes + (1 << 20), 8 << 20), 64 << 20)

    unroll = True if T <= 16 else 4
    kernel = functools.partial(bilstm_recurrence_kernel, hidden=H, unroll=unroll)

    out_tbf = pl.pallas_call(
        kernel,
        out_shape=jax.ShapeDtypeStruct((T, B, 2 * H), jnp.float32),
        grid=(B // bt,),
        in_specs=[
            pl.BlockSpec((T, bt, 8 * H), lambda b: (0, b, 0)),     # gate slab
            pl.BlockSpec((2 * H, 8 * H), lambda b: (0, 0)),        # fused W_hh
        ],
        out_specs=pl.BlockSpec((T, bt, 2 * H), lambda b: (0, b, 0)),
        compiler_params=pltpu.CompilerParams(
            dimension_semantics=("parallel",),
            vmem_limit_bytes=vmem_limit,
        ),
    )(xg, whh_fused)

    return jnp.transpose(out_tbf, (1, 0, 2))                       # (B, T, 2H)


# ---------------------------------------------------------------------------
# Parameter init mirroring subjLSTM.__init__.
# ---------------------------------------------------------------------------
def init_params(key, embedding_dim, hidden_dim, gain=1.0):
    """xavier_normal_ weights, PyTorch-default uniform(-1/sqrt(H), 1/sqrt(H))
    biases. Weights are stored pre-transposed for `x @ W`; the pair of LSTM
    biases (b_ih + b_hh) is folded into one (4H,) bias per direction."""
    H = hidden_dim // 2
    keys = jax.random.split(key, 8)

    def xavier(k, shape):                    # shape = (4H, fan_in), torch convention
        fan_out, fan_in = shape
        std = gain * (2.0 / (fan_in + fan_out)) ** 0.5
        return std * jax.random.normal(k, shape, jnp.float32)

    bound = 1.0 / (H ** 0.5)

    def bias(k):
        return jax.random.uniform(k, (4 * H,), jnp.float32, -bound, bound)

    w_ih_f = xavier(keys[0], (4 * H, embedding_dim))
    w_hh_f = xavier(keys[1], (4 * H, H))
    b_f = bias(keys[2]) + bias(keys[3])
    w_ih_b = xavier(keys[4], (4 * H, embedding_dim))
    w_hh_b = xavier(keys[5], (4 * H, H))
    b_b = bias(keys[6]) + bias(keys[7])

    return {
        "wih_f": w_ih_f.T, "whh_f": w_hh_f.T, "b_f": b_f,
        "wih_b": w_ih_b.T, "whh_b": w_hh_b.T, "b_b": b_b,
    }


# ---------------------------------------------------------------------------
# Pure-JAX reference (lax.scan, standard PyTorch i,f,g,o order) for checking.
# ---------------------------------------------------------------------------
def reference_bilstm(inputs, params):
    B, T, E = inputs.shape
    H = params["whh_f"].shape[0]
    x = jnp.transpose(inputs, (1, 0, 2))     # (T, B, E)

    def run_dir(wih, whh, b, xs):
        def cell(carry, x_t):
            h, c = carry
            gates = x_t @ wih + h @ whh + b
            i = jax.nn.sigmoid(gates[:, :H])
            f = jax.nn.sigmoid(gates[:, H:2 * H])
            g = jnp.tanh(gates[:, 2 * H:3 * H])
            o = jax.nn.sigmoid(gates[:, 3 * H:])
            c = f * c + i * g
            h = o * jnp.tanh(c)
            return (h, c), h
        init = (jnp.zeros((B, H), jnp.float32), jnp.zeros((B, H), jnp.float32))
        _, hs = lax.scan(cell, init, xs)
        return hs

    fwd = run_dir(params["wih_f"], params["whh_f"], params["b_f"], x)
    bwd = run_dir(params["wih_b"], params["whh_b"], params["b_b"], x[::-1])[::-1]
    return jnp.concatenate([fwd, bwd], axis=-1).transpose(1, 0, 2)


if __name__ == "__main__":
    key = jax.random.PRNGKey(0)
    kx, kp = jax.random.split(key)

    # Module hyper-params: embedding_dim=16, hidden_dim=32 -> per-direction H=16,
    # fused gate width 8H = 128 lanes (one full vreg / MXU column).
    B, T, E, hidden_dim = 2, 8, 16, 32

    # `inputs` in the PyTorch module is a list of B sequences of shape (T, E);
    # with equal lengths this is just a (B, T, E) batch.
    inputs = jax.random.normal(kx, (B, T, E), jnp.float32)
    params = init_params(kp, E, hidden_dim, gain=1.0)

    out = subj_lstm_forward(inputs, params)
    out = jax.block_until_ready(out)

    assert out.shape == (B, T, hidden_dim), out.shape
    ref = reference_bilstm(inputs, params)
    assert jnp.allclose(out, ref, atol=1e-4, rtol=1e-4), float(
        jnp.max(jnp.abs(out - ref)))

    print("KERNEL_OK")
</pallas_src>

<mosaic_0001>
module attributes {stable_mosaic.version = 11 : i64} {
  func.func @bilstm_recurrence_kernel(%arg0: i32, %arg1: memref<8x2x128xf32, #tpu.memory_space<vmem>>, %arg2: memref<32x128xf32, #tpu.memory_space<vmem>>, %arg3: memref<8x2x32xf32, #tpu.memory_space<vmem>>) attributes {dimension_semantics = [#tpu.dimension_semantics<parallel>], iteration_bounds = array<i64: 1>, scalar_prefetch = 0 : i64, scratch_operands = 0 : i64, tpu.core_type = #tpu.core_type<tc>, window_params = [{transform_indices = @transform_0, window_bounds = array<i64: 8, 2, 128>}, {pipeline_mode = #tpu.pipeline_mode<synchronous>, transform_indices = @transform_1, window_bounds = array<i64: 32, 128>}, {transform_indices = @transform_2, window_bounds = array<i64: 8, 2, 32>}]} {
    %c0 = arith.constant 0 : index
    %c0_0 = arith.constant 0 : index
    %0 = vector.load %arg2[%c0, %c0_0] : memref<32x128xf32, #tpu.memory_space<vmem>>, vector<32x128xf32>
    %cst = arith.constant 0.000000e+00 : f32
    %1 = vector.broadcast %cst : f32 to vector<2x32xf32>
    %cst_1 = arith.constant 0.000000e+00 : f32
    %2 = vector.broadcast %cst_1 : f32 to vector<2x32xf32>
    %c0_i32 = arith.constant 0 : i32
    %cst_2 = arith.constant dense<0.000000e+00> : vector<2x128xf32>
    %3 = tpu.matmul %1, %0, %cst_2 {dimension_numbers = #tpu.dot_dimension_numbers<[1], [0], [0], [1], [0, 0, 1, 1], [], []>} : vector<2x32xf32>, vector<32x128xf32>, vector<2x128xf32> -> vector<2x128xf32>
    %4 = arith.index_cast %c0_i32 : i32 to index
    %c0_3 = arith.constant 0 : index
    %c0_4 = arith.constant 0 : index
    %5 = vector.load %arg1[%4, %c0_3, %c0_4] : memref<8x2x128xf32, #tpu.memory_space<vmem>>, vector<1x2x128xf32>
    %6 = vector.shape_cast %5 : vector<1x2x128xf32> to vector<2x128xf32>
    %7 = arith.addf %3, %6 : vector<2x128xf32>
    %8 = vector.extract_strided_slice %7 {offsets = [0, 0], sizes = [2, 96], strides = [1, 1]} : vector<2x128xf32> to vector<2x96xf32>
    %9 = arith.negf %8 : vector<2x96xf32>
    %10 = math.exp %9 : vector<2x96xf32>
    %cst_5 = arith.constant 1.000000e+00 : f32
    %11 = vector.broadcast %cst_5 : f32 to vector<2x96xf32>
    %12 = arith.addf %11, %10 : vector<2x96xf32>
    %13 = arith.divf %11, %12 : vector<2x96xf32>
    %14 = vector.extract_strided_slice %13 {offsets = [0, 0], sizes = [2, 32], strides = [1, 1]} : vector<2x96xf32> to vector<2x32xf32>
    %15 = vector.extract_strided_slice %13 {offsets = [0, 32], sizes = [2, 32], strides = [1, 1]} : vector<2x96xf32> to vector<2x32xf32>
    %16 = vector.extract_strided_slice %13 {offsets = [0, 64], sizes = [2, 32], strides = [1, 1]} : vector<2x96xf32> to vector<2x32xf32>
    %17 = vector.extract_strided_slice %7 {offsets = [0, 96], sizes = [2, 32], strides = [1, 1]} : vector<2x128xf32> to vector<2x32xf32>
    %18 = math.tanh %17 : vector<2x32xf32>
    %19 = arith.mulf %15, %2 : vector<2x32xf32>
    %20 = arith.mulf %14, %18 : vector<2x32xf32>
    %21 = arith.addf %19, %20 : vector<2x32xf32>
    %22 = math.tanh %21 : vector<2x32xf32>
    %23 = arith.mulf %16, %22 : vector<2x32xf32>
    %24 = vector.extract_strided_slice %23 {offsets = [0, 0], sizes = [2, 16], strides = [1, 1]} : vector<2x32xf32> to vector<2x16xf32>
    %25 = arith.index_cast %c0_i32 : i32 to index
    %c0_6 = arith.constant 0 : index
    %c0_7 = arith.constant 0 : index
    %26 = vector.load %arg3[%25, %c0_6, %c0_7] : memref<8x2x32xf32, #tpu.memory_space<vmem>>, vector<1x2x16xf32>
    %27 = vector.shape_cast %26 : vector<1x2x16xf32> to vector<2x16xf32>
    %28 = vector.shape_cast %24 : vector<2x16xf32> to vector<1x2x16xf32>
    tpu.vector_store %arg3[%25, %c0_6, %c0_7], %28 {strides = array<i32>} : memref<8x2x32xf32, #tpu.memory_space<vmem>>, vector<1x2x16xf32>,
    %29 = vector.extract_strided_slice %23 {offsets = [0, 16], sizes = [2, 16], strides = [1, 1]} : vector<2x32xf32> to vector<2x16xf32>
    %c7_i32 = arith.constant 7 : i32
    %30 = arith.subi %c7_i32, %c0_i32 : i32
    %31 = arith.index_cast %30 : i32 to index
    %c0_8 = arith.constant 0 : index
    %c16 = arith.constant 16 : index
    %32 = vector.load %arg3[%31, %c0_8, %c16] : memref<8x2x32xf32, #tpu.memory_space<vmem>>, vector<1x2x16xf32>
    %33 = vector.shape_cast %32 : vector<1x2x16xf32> to vector<2x16xf32>
    %34 = vector.shape_cast %29 : vector<2x16xf32> to vector<1x2x16xf32>
    tpu.vector_store %arg3[%31, %c0_8, %c16], %34 {strides = array<i32>} : memref<8x2x32xf32, #tpu.memory_space<vmem>>, vector<1x2x16xf32>,
    %c1_i32 = arith.constant 1 : i32
    %cst_9 = arith.constant dense<0.000000e+00> : vector<2x128xf32>
    %35 = tpu.matmul %23, %0, %cst_9 {dimension_numbers = #tpu.dot_dimension_numbers<[1], [0], [0], [1], [0, 0, 1, 1], [], []>} : vector<2x32xf32>, vector<32x128xf32>, vector<2x128xf32> -> vector<2x128xf32>
    %36 = arith.index_cast %c1_i32 : i32 to index
    %c0_10 = arith.constant 0 : index
    %c0_11 = arith.constant 0 : index
    %37 = vector.load %arg1[%36, %c0_10, %c0_11] : memref<8x2x128xf32, #tpu.memory_space<vmem>>, vector<1x2x128xf32>
    %38 = vector.shape_cast %37 : vector<1x2x128xf32> to vector<2x128xf32>
    %39 = arith.addf %35, %38 : vector<2x128xf32>
    %40 = vector.extract_strided_slice %39 {offsets = [0, 0], sizes = [2, 96], strides = [1, 1]} : vector<2x128xf32> to vector<2x96xf32>
    %41 = arith.negf %40 : vector<2x96xf32>
    %42 = math.exp %41 : vector<2x96xf32>
    %cst_12 = arith.constant 1.000000e+00 : f32
    %43 = vector.broadcast %cst_12 : f32 to vector<2x96xf32>
    %44 = arith.addf %43, %42 : vector<2x96xf32>
    %45 = arith.divf %43, %44 : vector<2x96xf32>
    %46 = vector.extract_strided_slice %45 {offsets = [0, 0], sizes = [2, 32], strides = [1, 1]} : vector<2x96xf32> to vector<2x32xf32>
    %47 = vector.extract_strided_slice %45 {offsets = [0, 32], sizes = [2, 32], strides = [1, 1]} : vector<2x96xf32> to vector<2x32xf32>
    %48 = vector.extract_strided_slice %45 {offsets = [0, 64], sizes = [2, 32], strides = [1, 1]} : vector<2x96xf32> to vector<2x32xf32>
    %49 = vector.extract_strided_slice %39 {offsets = [0, 96], sizes = [2, 32], strides = [1, 1]} : vector<2x128xf32> to vector<2x32xf32>
    %50 = math.tanh %49 : vector<2x32xf32>
    %51 = arith.mulf %47, %21 : vector<2x32xf32>
    %52 = arith.mulf %46, %50 : vector<2x32xf32>
    %53 = arith.addf %51, %52 : vector<2x32xf32>
    %54 = math.tanh %53 : vector<2x32xf32>
    %55 = arith.mulf %48, %54 : vector<2x32xf32>
    %56 = vector.extract_strided_slice %55 {offsets = [0, 0], sizes = [2, 16], strides = [1, 1]} : vector<2x32xf32> to vector<2x16xf32>
    %57 = arith.index_cast %c1_i32 : i32 to index
    %c0_13 = arith.constant 0 : index
    %c0_14 = arith.constant 0 : index
    %58 = vector.load %arg3[%57, %c0_13, %c0_14] : memref<8x2x32xf32, #tpu.memory_space<vmem>>, vector<1x2x16xf32>
    %59 = vector.shape_cast %58 : vector<1x2x16xf32> to vector<2x16xf32>
    %60 = vector.shape_cast %56 : vector<2x16xf32> to vector<1x2x16xf32>
    tpu.vector_store %arg3[%57, %c0_13, %c0_14], %60 {strides = array<i32>} : memref<8x2x32xf32, #tpu.memory_space<vmem>>, vector<1x2x16xf32>,
    %61 = vector.extract_strided_slice %55 {offsets = [0, 16], sizes = [2, 16], strides = [1, 1]} : vector<2x32xf32> to vector<2x16xf32>
    %c7_i32_15 = arith.constant 7 : i32
    %62 = arith.subi %c7_i32_15, %c1_i32 : i32
    %63 = arith.index_cast %62 : i32 to index
    %c0_16 = arith.constant 0 : index
    %c16_17 = arith.constant 16 : index
    %64 = vector.load %arg3[%63, %c0_16, %c16_17] : memref<8x2x32xf32, #tpu.memory_space<vmem>>, vector<1x2x16xf32>
    %65 = vector.shape_cast %64 : vector<1x2x16xf32> to vector<2x16xf32>
    %66 = vector.shape_cast %61 : vector<2x16xf32> to vector<1x2x16xf32>
    tpu.vector_store %arg3[%63, %c0_16, %c16_17], %66 {strides = array<i32>} : memref<8x2x32xf32, #tpu.memory_space<vmem>>, vector<1x2x16xf32>,
    %c2_i32 = arith.constant 2 : i32
    %cst_18 = arith.constant dense<0.000000e+00> : vector<2x128xf32>
    %67 = tpu.matmul %55, %0, %cst_18 {dimension_numbers = #tpu.dot_dimension_numbers<[1], [0], [0], [1], [0, 0, 1, 1], [], []>} : vector<2x32xf32>, vector<32x128xf32>, vector<2x128xf32> -> vector<2x128xf32>
    %68 = arith.index_cast %c2_i32 : i32 to index
    %c0_19 = arith.constant 0 : index
    %c0_20 = arith.constant 0 : index
    %69 = vector.load %arg1[%68, %c0_19, %c0_20] : memref<8x2x128xf32, #tpu.memory_space<vmem>>, vector<1x2x128xf32>
    %70 = vector.shape_cast %69 : vector<1x2x128xf32> to vector<2x128xf32>
    %71 = arith.addf %67, %70 : vector<2x128xf32>
    %72 = vector.extract_strided_slice %71 {offsets = [0, 0], sizes = [2, 96], strides = [1, 1]} : vector<2x128xf32> to vector<2x96xf32>
    %73 = arith.negf %72 : vector<2x96xf32>
    %74 = math.exp %73 : vector<2x96xf32>
    %cst_21 = arith.constant 1.000000e+00 : f32
    %75 = vector.broadcast %cst_21 : f32 to vector<2x96xf32>
    %76 = arith.addf %75, %74 : vector<2x96xf32>
    %77 = arith.divf %75, %76 : vector<2x96xf32>
    %78 = vector.extract_strided_slice %77 {offsets = [0, 0], sizes = [2, 32], strides = [1, 1]} : vector<2x96xf32> to vector<2x32xf32>
    %79 = vector.extract_strided_slice %77 {offsets = [0, 32], sizes = [2, 32], strides = [1, 1]} : vector<2x96xf32> to vector<2x32xf32>
    %80 = vector.extract_strided_slice %77 {offsets = [0, 64], sizes = [2, 32], strides = [1, 1]} : vector<2x96xf32> to vector<2x32xf32>
    %81 = vector.extract_strided_slice %71 {offsets = [0, 96], sizes = [2, 32], strides = [1, 1]} : vector<2x128xf32> to vector<2x32xf32>
    %82 = math.tanh %81 : vector<2x32xf32>
    %83 = arith.mulf %79, %53 : vector<2x32xf32>
    %84 = arith.mulf %78, %82 : vector<2x32xf32>
    %85 = arith.addf %83, %84 : vector<2x32xf32>
    %86 = math.tanh %85 : vector<2x32xf32>
    %87 = arith.mulf %80, %86 : vector<2x32xf32>
    %88 = vector.extract_strided_slice %87 {offsets = [0, 0], sizes = [2, 16], strides = [1, 1]} : vector<2x32xf32> to vector<2x16xf32>
    %89 = arith.index_cast %c2_i32 : i32 to index
    %c0_22 = arith.constant 0 : index
    %c0_23 = arith.constant 0 : index
    %90 = vector.load %arg3[%89, %c0_22, %c0_23] : memref<8x2x32xf32, #tpu.memory_space<vmem>>, vector<1x2x16xf32>
    %91 = vector.shape_cast %90 : vector<1x2x16xf32> to vector<2x16xf32>
    %92 = vector.shape_cast %88 : vector<2x16xf32> to vector<1x2x16xf32>
    tpu.vector_store %arg3[%89, %c0_22, %c0_23], %92 {strides = array<i32>} : memref<8x2x32xf32, #tpu.memory_space<vmem>>, vector<1x2x16xf32>,
    %93 = vector.extract_strided_slice %87 {offsets = [0, 16], sizes = [2, 16], strides = [1, 1]} : vector<2x32xf32> to vector<2x16xf32>
    %c7_i32_24 = arith.constant 7 : i32
    %94 = arith.subi %c7_i32_24, %c2_i32 : i32
    %95 = arith.index_cast %94 : i32 to index
    %c0_25 = arith.constant 0 : index
    %c16_26 = arith.constant 16 : index
    %96 = vector.load %arg3[%95, %c0_25, %c16_26] : memref<8x2x32xf32, #tpu.memory_space<vmem>>, vector<1x2x16xf32>
    %97 = vector.shape_cast %96 : vector<1x2x16xf32> to vector<2x16xf32>
    %98 = vector.shape_cast %93 : vector<2x16xf32> to vector<1x2x16xf32>
    tpu.vector_store %arg3[%95, %c0_25, %c16_26], %98 {strides = array<i32>} : memref<8x2x32xf32, #tpu.memory_space<vmem>>, vector<1x2x16xf32>,
    %c3_i32 = arith.constant 3 : i32
    %cst_27 = arith.constant dense<0.000000e+00> : vector<2x128xf32>
    %99 = tpu.matmul %87, %0, %cst_27 {dimension_numbers = #tpu.dot_dimension_numbers<[1], [0], [0], [1], [0, 0, 1, 1], [], []>} : vector<2x32xf32>, vector<32x128xf32>, vector<2x128xf32> -> vector<2x128xf32>
    %100 = arith.index_cast %c3_i32 : i32 to index
    %c0_28 = arith.constant 0 : index
    %c0_29 = arith.constant 0 : index
    %101 = vector.load %arg1[%100, %c0_28, %c0_29] : memref<8x2x128xf32, #tpu.memory_space<vmem>>, vector<1x2x128xf32>
    %102 = vector.shape_cast %101 : vector<1x2x128xf32> to vector<2x128xf32>
    %103 = arith.addf %99, %102 : vector<2x128xf32>
    %104 = vector.extract_strided_slice %103 {offsets = [0, 0], sizes = [2, 96], strides = [1, 1]} : vector<2x128xf32> to vector<2x96xf32>
    %105 = arith.negf %104 : vector<2x96xf32>
    %106 = math.exp %105 : vector<2x96xf32>
    %cst_30 = arith.constant 1.000000e+00 : f32
    %107 = vector.broadcast %cst_30 : f32 to vector<2x96xf32>
    %108 = arith.addf %107, %106 : vector<2x96xf32>
    %109 = arith.divf %107, %108 : vector<2x96xf32>
    %110 = vector.extract_strided_slice %109 {offsets = [0, 0], sizes = [2, 32], strides = [1, 1]} : vector<2x96xf32> to vector<2x32xf32>
    %111 = vector.extract_strided_slice %109 {offsets = [0, 32], sizes = [2, 32], strides = [1, 1]} : vector<2x96xf32> to vector<2x32xf32>
    %112 = vector.extract_strided_slice %109 {offsets = [0, 64], sizes = [2, 32], strides = [1, 1]} : vector<2x96xf32> to vector<2x32xf32>
    %113 = vector.extract_strided_slice %103 {offsets = [0, 96], sizes = [2, 32], strides = [1, 1]} : vector<2x128xf32> to vector<2x32xf32>
    %114 = math.tanh %113 : vector<2x32xf32>
    %115 = arith.mulf %111, %85 : vector<2x32xf32>
    %116 = arith.mulf %110, %114 : vector<2x32xf32>
    %117 = arith.addf %115, %116 : vector<2x32xf32>
    %118 = math.tanh %117 : vector<2x32xf32>
    %119 = arith.mulf %112, %118 : vector<2x32xf32>
    %120 = vector.extract_strided_slice %119 {offsets = [0, 0], sizes = [2, 16], strides = [1, 1]} : vector<2x32xf32> to vector<2x16xf32>
    %121 = arith.index_cast %c3_i32 : i32 to index
    %c0_31 = arith.constant 0 : index
    %c0_32 = arith.constant 0 : index
    %122 = vector.load %arg3[%121, %c0_31, %c0_32] : memref<8x2x32xf32, #tpu.memory_space<vmem>>, vector<1x2x16xf32>
    %123 = vector.shape_cast %122 : vector<1x2x16xf32> to vector<2x16xf32>
    %124 = vector.shape_cast %120 : vector<2x16xf32> to vector<1x2x16xf32>
    tpu.vector_store %arg3[%121, %c0_31, %c0_32], %124 {strides = array<i32>} : memref<8x2x32xf32, #tpu.memory_space<vmem>>, vector<1x2x16xf32>,
    %125 = vector.extract_strided_slice %119 {offsets = [0, 16], sizes = [2, 16], strides = [1, 1]} : vector<2x32xf32> to vector<2x16xf32>
    %c7_i32_33 = arith.constant 7 : i32
    %126 = arith.subi %c7_i32_33, %c3_i32 : i32
    %127 = arith.index_cast %126 : i32 to index
    %c0_34 = arith.constant 0 : index
    %c16_35 = arith.constant 16 : index
    %128 = vector.load %arg3[%127, %c0_34, %c16_35] : memref<8x2x32xf32, #tpu.memory_space<vmem>>, vector<1x2x16xf32>
    %129 = vector.shape_cast %128 : vector<1x2x16xf32> to vector<2x16xf32>
    %130 = vector.shape_cast %125 : vector<2x16xf32> to vector<1x2x16xf32>
    tpu.vector_store %arg3[%127, %c0_34, %c16_35], %130 {strides = array<i32>} : memref<8x2x32xf32, #tpu.memory_space<vmem>>, vector<1x2x16xf32>,
    %c4_i32 = arith.constant 4 : i32
    %cst_36 = arith.constant dense<0.000000e+00> : vector<2x128xf32>
    %131 = tpu.matmul %119, %0, %cst_36 {dimension_numbers = #tpu.dot_dimension_numbers<[1], [0], [0], [1], [0, 0, 1, 1], [], []>} : vector<2x32xf32>, vector<32x128xf32>, vector<2x128xf32> -> vector<2x128xf32>
    %132 = arith.index_cast %c4_i32 : i32 to index
    %c0_37 = arith.constant 0 : index
    %c0_38 = arith.constant 0 : index
    %133 = vector.load %arg1[%132, %c0_37, %c0_38] : memref<8x2x128xf32, #tpu.memory_space<vmem>>, vector<1x2x128xf32>
    %134 = vector.shape_cast %133 : vector<1x2x128xf32> to vector<2x128xf32>
    %135 = arith.addf %131, %134 : vector<2x128xf32>
    %136 = vector.extract_strided_slice %135 {offsets = [0, 0], sizes = [2, 96], strides = [1, 1]} : vector<2x128xf32> to vector<2x96xf32>
    %137 = arith.negf %136 : vector<2x96xf32>
    %138 = math.exp %137 : vector<2x96xf32>
    %cst_39 = arith.constant 1.000000e+00 : f32
    %139 = vector.broadcast %cst_39 : f32 to vector<2x96xf32>
    %140 = arith.addf %139, %138 : vector<2x96xf32>
    %141 = arith.divf %139, %140 : vector<2x96xf32>
    %142 = vector.extract_strided_slice %141 {offsets = [0, 0], sizes = [2, 32], strides = [1, 1]} : vector<2x96xf32> to vector<2x32xf32>
    %143 = vector.extract_strided_slice %141 {offsets = [0, 32], sizes = [2, 32], strides = [1, 1]} : vector<2x96xf32> to vector<2x32xf32>
    %144 = vector.extract_strided_slice %141 {offsets = [0, 64], sizes = [2, 32], strides = [1, 1]} : vector<2x96xf32> to vector<2x32xf32>
    %145 = vector.extract_strided_slice %135 {offsets = [0, 96], sizes = [2, 32], strides = [1, 1]} : vector<2x128xf32> to vector<2x32xf32>
    %146 = math.tanh %145 : vector<2x32xf32>
    %147 = arith.mulf %143, %117 : vector<2x32xf32>
    %148 = arith.mulf %142, %146 : vector<2x32xf32>
    %149 = arith.addf %147, %148 : vector<2x32xf32>
    %150 = math.tanh %149 : vector<2x32xf32>
    %151 = arith.mulf %144, %150 : vector<2x32xf32>
    %152 = vector.extract_strided_slice %151 {offsets = [0, 0], sizes = [2, 16], strides = [1, 1]} : vector<2x32xf32> to vector<2x16xf32>
    %153 = arith.index_cast %c4_i32 : i32 to index
    %c0_40 = arith.constant 0 : index
    %c0_41 = arith.constant 0 : index
    %154 = vector.load %arg3[%153, %c0_40, %c0_41] : memref<8x2x32xf32, #tpu.memory_space<vmem>>, vector<1x2x16xf32>
    %155 = vector.shape_cast %154 : vector<1x2x16xf32> to vector<2x16xf32>
    %156 = vector.shape_cast %152 : vector<2x16xf32> to vector<1x2x16xf32>
    tpu.vector_store %arg3[%153, %c0_40, %c0_41], %156 {strides = array<i32>} : memref<8x2x32xf32, #tpu.memory_space<vmem>>, vector<1x2x16xf32>,
    %157 = vector.extract_strided_slice %151 {offsets = [0, 16], sizes = [2, 16], strides = [1, 1]} : vector<2x32xf32> to vector<2x16xf32>
    %c7_i32_42 = arith.constant 7 : i32
    %158 = arith.subi %c7_i32_42, %c4_i32 : i32
    %159 = arith.index_cast %158 : i32 to index
    %c0_43 = arith.constant 0 : index
    %c16_44 = arith.constant 16 : index
    %160 = vector.load %arg3[%159, %c0_43, %c16_44] : memref<8x2x32xf32, #tpu.memory_space<vmem>>, vector<1x2x16xf32>
    %161 = vector.shape_cast %160 : vector<1x2x16xf32> to vector<2x16xf32>
    %162 = vector.shape_cast %157 : vector<2x16xf32> to vector<1x2x16xf32>
    tpu.vector_store %arg3[%159, %c0_43, %c16_44], %162 {strides = array<i32>} : memref<8x2x32xf32, #tpu.memory_space<vmem>>, vector<1x2x16xf32>,
    %c5_i32 = arith.constant 5 : i32
    %cst_45 = arith.constant dense<0.000000e+00> : vector<2x128xf32>
    %163 = tpu.matmul %151, %0, %cst_45 {dimension_numbers = #tpu.dot_dimension_numbers<[1], [0], [0], [1], [0, 0, 1, 1], [], []>} : vector<2x32xf32>, vector<32x128xf32>, vector<2x128xf32> -> vector<2x128xf32>
    %164 = arith.index_cast %c5_i32 : i32 to index
    %c0_46 = arith.constant 0 : index
    %c0_47 = arith.constant 0 : index
    %165 = vector.load %arg1[%164, %c0_46, %c0_47] : memref<8x2x128xf32, #tpu.memory_space<vmem>>, vector<1x2x128xf32>
    %166 = vector.shape_cast %165 : vector<1x2x128xf32> to vector<2x128xf32>
    %167 = arith.addf %163, %166 : vector<2x128xf32>
    %168 = vector.extract_strided_slice %167 {offsets = [0, 0], sizes = [2, 96], strides = [1, 1]} : vector<2x128xf32> to vector<2x96xf32>
    %169 = arith.negf %168 : vector<2x96xf32>
    %170 = math.exp %169 : vector<2x96xf32>
    %cst_48 = arith.constant 1.000000e+00 : f32
    %171 = vector.broadcast %cst_48 : f32 to vector<2x96xf32>
    %172 = arith.addf %171, %170 : vector<2x96xf32>
    %173 = arith.divf %171, %172 : vector<2x96xf32>
    %174 = vector.extract_strided_slice %173 {offsets = [0, 0], sizes = [2, 32], strides = [1, 1]} : vector<2x96xf32> to vector<2x32xf32>
    %175 = vector.extract_strided_slice %173 {offsets = [0, 32], sizes = [2, 32], strides = [1, 1]} : vector<2x96xf32> to vector<2x32xf32>
    %176 = vector.extract_strided_slice %173 {offsets = [0, 64], sizes = [2, 32], strides = [1, 1]} : vector<2x96xf32> to vector<2x32xf32>
    %177 = vector.extract_strided_slice %167 {offsets = [0, 96], sizes = [2, 32], strides = [1, 1]} : vector<2x128xf32> to vector<2x32xf32>
    %178 = math.tanh %177 : vector<2x32xf32>
    %179 = arith.mulf %175, %149 : vector<2x32xf32>
    %180 = arith.mulf %174, %178 : vector<2x32xf32>
    %181 = arith.addf %179, %180 : vector<2x32xf32>
    %182 = math.tanh %181 : vector<2x32xf32>
    %183 = arith.mulf %176, %182 : vector<2x32xf32>
    %184 = vector.extract_strided_slice %183 {offsets = [0, 0], sizes = [2, 16], strides = [1, 1]} : vector<2x32xf32> to vector<2x16xf32>
    %185 = arith.index_cast %c5_i32 : i32 to index
    %c0_49 = arith.constant 0 : index
    %c0_50 = arith.constant 0 : index
    %186 = vector.load %arg3[%185, %c0_49, %c0_50] : memref<8x2x32xf32, #tpu.memory_space<vmem>>, vector<1x2x16xf32>
    %187 = vector.shape_cast %186 : vector<1x2x16xf32> to vector<2x16xf32>
    %188 = vector.shape_cast %184 : vector<2x16xf32> to vector<1x2x16xf32>
    tpu.vector_store %arg3[%185, %c0_49, %c0_50], %188 {strides = array<i32>} : memref<8x2x32xf32, #tpu.memory_space<vmem>>, vector<1x2x16xf32>,
    %189 = vector.extract_strided_slice %183 {offsets = [0, 16], sizes = [2, 16], strides = [1, 1]} : vector<2x32xf32> to vector<2x16xf32>
    %c7_i32_51 = arith.constant 7 : i32
    %190 = arith.subi %c7_i32_51, %c5_i32 : i32
    %191 = arith.index_cast %190 : i32 to index
    %c0_52 = arith.constant 0 : index
    %c16_53 = arith.constant 16 : index
    %192 = vector.load %arg3[%191, %c0_52, %c16_53] : memref<8x2x32xf32, #tpu.memory_space<vmem>>, vector<1x2x16xf32>
    %193 = vector.shape_cast %192 : vector<1x2x16xf32> to vector<2x16xf32>
    %194 = vector.shape_cast %189 : vector<2x16xf32> to vector<1x2x16xf32>
    tpu.vector_store %arg3[%191, %c0_52, %c16_53], %194 {strides = array<i32>} : memref<8x2x32xf32, #tpu.memory_space<vmem>>, vector<1x2x16xf32>,
    %c6_i32 = arith.constant 6 : i32
    %cst_54 = arith.constant dense<0.000000e+00> : vector<2x128xf32>
    %195 = tpu.matmul %183, %0, %cst_54 {dimension_numbers = #tpu.dot_dimension_numbers<[1], [0], [0], [1], [0, 0, 1, 1], [], []>} : vector<2x32xf32>, vector<32x128xf32>, vector<2x128xf32> -> vector<2x128xf32>
    %196 = arith.index_cast %c6_i32 : i32 to index
    %c0_55 = arith.constant 0 : index
    %c0_56 = arith.constant 0 : index
    %197 = vector.load %arg1[%196, %c0_55, %c0_56] : memref<8x2x128xf32, #tpu.memory_space<vmem>>, vector<1x2x128xf32>
    %198 = vector.shape_cast %197 : vector<1x2x128xf32> to vector<2x128xf32>
    %199 = arith.addf %195, %198 : vector<2x128xf32>
    %200 = vector.extract_strided_slice %199 {offsets = [0, 0], sizes = [2, 96], strides = [1, 1]} : vector<2x128xf32> to vector<2x96xf32>
    %201 = arith.negf %200 : vector<2x96xf32>
    %202 = math.exp %201 : vector<2x96xf32>
    %cst_57 = arith.constant 1.000000e+00 : f32
    %203 = vector.broadcast %cst_57 : f32 to vector<2x96xf32>
    %204 = arith.addf %203, %202 : vector<2x96xf32>
    %205 = arith.divf %203, %204 : vector<2x96xf32>
    %206 = vector.extract_strided_slice %205 {offsets = [0, 0], sizes = [2, 32], strides = [1, 1]} : vector<2x96xf32> to vector<2x32xf32>
    %207 = vector.extract_strided_slice %205 {offsets = [0, 32], sizes = [2, 32], strides = [1, 1]} : vector<2x96xf32> to vector<2x32xf32>
    %208 = vector.extract_strided_slice %205 {offsets = [0, 64], sizes = [2, 32], strides = [1, 1]} : vector<2x96xf32> to vector<2x32xf32>
    %209 = vector.extract_strided_slice %199 {offsets = [0, 96], sizes = [2, 32], strides = [1, 1]} : vector<2x128xf32> to vector<2x32xf32>
    %210 = math.tanh %209 : vector<2x32xf32>
    %211 = arith.mulf %207, %181 : vector<2x32xf32>
    %212 = arith.mulf %206, %210 : vector<2x32xf32>
    %213 = arith.addf %211, %212 : vector<2x32xf32>
    %214 = math.tanh %213 : vector<2x32xf32>
    %215 = arith.mulf %208, %214 : vector<2x32xf32>
    %216 = vector.extract_strided_slice %215 {offsets = [0, 0], sizes = [2, 16], strides = [1, 1]} : vector<2x32xf32> to vector<2x16xf32>
    %217 = arith.index_cast %c6_i32 : i32 to index
    %c0_58 = arith.constant 0 : index
    %c0_59 = arith.constant 0 : index
    %218 = vector.load %arg3[%217, %c0_58, %c0_59] : memref<8x2x32xf32, #tpu.memory_space<vmem>>, vector<1x2x16xf32>
    %219 = vector.shape_cast %218 : vector<1x2x16xf32> to vector<2x16xf32>
    %220 = vector.shape_cast %216 : vector<2x16xf32> to vector<1x2x16xf32>
    tpu.vector_store %arg3[%217, %c0_58, %c0_59], %220 {strides = array<i32>} : memref<8x2x32xf32, #tpu.memory_space<vmem>>, vector<1x2x16xf32>,
    %221 = vector.extract_strided_slice %215 {offsets = [0, 16], sizes = [2, 16], strides = [1, 1]} : vector<2x32xf32> to vector<2x16xf32>
    %c7_i32_60 = arith.constant 7 : i32
    %222 = arith.subi %c7_i32_60, %c6_i32 : i32
    %223 = arith.index_cast %222 : i32 to index
    %c0_61 = arith.constant 0 : index
    %c16_62 = arith.constant 16 : index
    %224 = vector.load %arg3[%223, %c0_61, %c16_62] : memref<8x2x32xf32, #tpu.memory_space<vmem>>, vector<1x2x16xf32>
    %225 = vector.shape_cast %224 : vector<1x2x16xf32> to vector<2x16xf32>
    %226 = vector.shape_cast %221 : vector<2x16xf32> to vector<1x2x16xf32>
    tpu.vector_store %arg3[%223, %c0_61, %c16_62], %226 {strides = array<i32>} : memref<8x2x32xf32, #tpu.memory_space<vmem>>, vector<1x2x16xf32>,
    %c7_i32_63 = arith.constant 7 : i32
    %cst_64 = arith.constant dense<0.000000e+00> : vector<2x128xf32>
    %227 = tpu.matmul %215, %0, %cst_64 {dimension_numbers = #tpu.dot_dimension_numbers<[1], [0], [0], [1], [0, 0, 1, 1], [], []>} : vector<2x32xf32>, vector<32x128xf32>, vector<2x128xf32> -> vector<2x128xf32>
    %228 = arith.index_cast %c7_i32_63 : i32 to index
    %c0_65 = arith.constant 0 : index
    %c0_66 = arith.constant 0 : index
    %229 = vector.load %arg1[%228, %c0_65, %c0_66] : memref<8x2x128xf32, #tpu.memory_space<vmem>>, vector<1x2x128xf32>
    %230 = vector.shape_cast %229 : vector<1x2x128xf32> to vector<2x128xf32>
    %231 = arith.addf %227, %230 : vector<2x128xf32>
    %232 = vector.extract_strided_slice %231 {offsets = [0, 0], sizes = [2, 96], strides = [1, 1]} : vector<2x128xf32> to vector<2x96xf32>
    %233 = arith.negf %232 : vector<2x96xf32>
    %234 = math.exp %233 : vector<2x96xf32>
    %cst_67 = arith.constant 1.000000e+00 : f32
    %235 = vector.broadcast %cst_67 : f32 to vector<2x96xf32>
    %236 = arith.addf %235, %234 : vector<2x96xf32>
    %237 = arith.divf %235, %236 : vector<2x96xf32>
    %238 = vector.extract_strided_slice %237 {offsets = [0, 0], sizes = [2, 32], strides = [1, 1]} : vector<2x96xf32> to vector<2x32xf32>
    %239 = vector.extract_strided_slice %237 {offsets = [0, 32], sizes = [2, 32], strides = [1, 1]} : vector<2x96xf32> to vector<2x32xf32>
    %240 = vector.extract_strided_slice %237 {offsets = [0, 64], sizes = [2, 32], strides = [1, 1]} : vector<2x96xf32> to vector<2x32xf32>
    %241 = vector.extract_strided_slice %231 {offsets = [0, 96], sizes = [2, 32], strides = [1, 1]} : vector<2x128xf32> to vector<2x32xf32>
    %242 = math.tanh %241 : vector<2x32xf32>
    %243 = arith.mulf %239, %213 : vector<2x32xf32>
    %244 = arith.mulf %238, %242 : vector<2x32xf32>
    %245 = arith.addf %243, %244 : vector<2x32xf32>
    %246 = math.tanh %245 : vector<2x32xf32>
    %247 = arith.mulf %240, %246 : vector<2x32xf32>
    %248 = vector.extract_strided_slice %247 {offsets = [0, 0], sizes = [2, 16], strides = [1, 1]} : vector<2x32xf32> to vector<2x16xf32>
    %249 = arith.index_cast %c7_i32_63 : i32 to index
    %c0_68 = arith.constant 0 : index
    %c0_69 = arith.constant 0 : index
    %250 = vector.load %arg3[%249, %c0_68, %c0_69] : memref<8x2x32xf32, #tpu.memory_space<vmem>>, vector<1x2x16xf32>
    %251 = vector.shape_cast %250 : vector<1x2x16xf32> to vector<2x16xf32>
    %252 = vector.shape_cast %248 : vector<2x16xf32> to vector<1x2x16xf32>
    tpu.vector_store %arg3[%249, %c0_68, %c0_69], %252 {strides = array<i32>} : memref<8x2x32xf32, #tpu.memory_space<vmem>>, vector<1x2x16xf32>,
    %253 = vector.extract_strided_slice %247 {offsets = [0, 16], sizes = [2, 16], strides = [1, 1]} : vector<2x32xf32> to vector<2x16xf32>
    %c7_i32_70 = arith.constant 7 : i32
    %254 = arith.subi %c7_i32_70, %c7_i32_63 : i32
    %255 = arith.index_cast %254 : i32 to index
    %c0_71 = arith.constant 0 : index
    %c16_72 = arith.constant 16 : index
    %256 = vector.load %arg3[%255, %c0_71, %c16_72] : memref<8x2x32xf32, #tpu.memory_space<vmem>>, vector<1x2x16xf32>
    %257 = vector.shape_cast %256 : vector<1x2x16xf32> to vector<2x16xf32>
    %258 = vector.shape_cast %253 : vector<2x16xf32> to vector<1x2x16xf32>
    tpu.vector_store %arg3[%255, %c0_71, %c16_72], %258 {strides = array<i32>} : memref<8x2x32xf32, #tpu.memory_space<vmem>>, vector<1x2x16xf32>,
    %c8_i32 = arith.constant 8 : i32
    return
  }
  func.func @transform_0(%arg0: i32) -> (i32, i32, i32) {
    %c0_i32 = arith.constant 0 : i32
    %c0_i32_0 = arith.constant 0 : i32
    %c0_i32_1 = arith.constant 0 : i32
    return %c0_i32, %arg0, %c0_i32_0 : i32, i32, i32
  }
  func.func @transform_1(%arg0: i32) -> (i32, i32) {
    %c0_i32 = arith.constant 0 : i32
    %c0_i32_0 = arith.constant 0 : i32
    %c0_i32_1 = arith.constant 0 : i32
    return %c0_i32, %c0_i32_0 : i32, i32
  }
  func.func @transform_2(%arg0: i32) -> (i32, i32, i32) {
    %c0_i32 = arith.constant 0 : i32
    %c0_i32_0 = arith.constant 0 : i32
    %c0_i32_1 = arith.constant 0 : i32
    return %c0_i32, %arg0, %c0_i32_0 : i32, i32, i32
  }
}

</mosaic_0001>

<llo_original>
// kernel: subj_lstm_forward.1
$region0: #{subj_lstm_forward.1}
  #allocation0 [shape = 'u32[]', space=smem, size = 0x4, offset = 0x4, fixed_abs, tag = 'smem constant byte address 0x4 - core index']
  #allocation1 [shape = 'u32[144,128]{1,0:T(1,128)}', space=vmem, size = 0x12000, scoped, tag = 'internal scratch']
  %s0 = inlined_call_operand.vmem [shape: f32[8,2,128], index: 0, kind: input, shape index: {}]
  %s1 = inlined_call_operand.vmem [shape: f32[32,128], index: 1, kind: input, shape index: {}]
  %s2 = inlined_call_operand.vmem [shape: f32[8,2,32], index: 2, kind: output, shape index: {}]
  %s3 = sld [smem:[#allocation0]]
  $region18: #{subj_lstm_forward.1} parent=0
    _
  %s5 = ssub.s32 1, %s3
  %s6 = scalar_select 0, %s5, %s3
  // Predicated region
  $region2: #{subj_lstm_forward.1} parent=0 // pred_check
    _
  $region3: #{subj_lstm_forward.1} parent=0 // pred_check_branch
    %8 = sbr.rel (0) target = $region5
  $region4: #{subj_lstm_forward.1} parent=0 // pred_region
    _
  $region5: #{subj_lstm_forward.1} parent=0 // pred_fallthru
    _
  // Predicated region
  $region6: #{subj_lstm_forward.1} parent=0 // pred_check
    _
  $region7: #{subj_lstm_forward.1} parent=0 // pred_check_branch
    %10 = sbr.rel (0) target = $region9
  $region8: #{subj_lstm_forward.1} parent=0 // pred_region
    _
  $region9: #{subj_lstm_forward.1} parent=0 // pred_fallthru
    _
  %v11 = vld [vmem:[%s1] sm:$0xff]
  %v12 = vld [vmem:[%s1 + $0x8] sm:$0xff]
  %v13 = vld [vmem:[%s1 + $0x10] sm:$0xff]
  %v14 = vld [vmem:[%s1 + $0x18] sm:$0xff]
  %v15 = vld [vmem:[%s0] sm:$0x3]
  %vm16 = vcmask 261120
  %v18 = vsel %vm16, 0.0, 0
  %20 = vmatprep.subr.mxu0 0.0
  %21 = vmatpush1.msra.mxu0 %v11
  %22 = vmatprep.subr.mxu0 0.0
  %23 = vmatpush1.msra.mxu0 %v12
  %24 = vmatprep.subr.mxu0 0.0
  %25 = vmatpush1.msra.mxu0 %v13
  %26 = vmatprep.subr.mxu0 0.0
  %27 = vmatpush1.msra.mxu0 %v14
  %28 = vmatprep.subr.mxu0 0.0
  %29 = vmatpush1.msra.mxu0 0.0
  %30 = vmatprep.subr.mxu0 0.0
  %31 = vmatpush1.msra.mxu0 0.0
  %32 = vmatprep.subr.mxu0 0.0
  %33 = vmatpush1.msra.mxu0 0.0
  %34 = vmatprep.subr.mxu0 0.0
  %35 = vmatpush1.msra.mxu0 0.0
  %36 = vmatprep.subr.mxu0 0.0
  %37 = vmatpush1.msra.mxu0 0.0
  %38 = vmatprep.subr.mxu0 0.0
  %39 = vmatpush1.msra.mxu0 0.0
  %40 = vmatprep.subr.mxu0 0.0
  %41 = vmatpush1.msra.mxu0 0.0
  %42 = vmatprep.subr.mxu0 0.0
  %43 = vmatpush1.msra.mxu0 0.0
  %44 = vmatprep.subr.mxu0 0.0
  %45 = vmatpush1.msra.mxu0 0.0
  %46 = vmatprep.subr.mxu0 0.0
  %47 = vmatpush1.msra.mxu0 0.0
  %48 = vmatprep.subr.mxu0 0.0
  %49 = vmatpush1.msra.mxu0 0.0
  %50 = vmatprep.subr.mxu0 0.0
  %51 = vmatpush1.msra.mxu0 0.0
  %52 = vmatprep.subr.mxu0 0.0
  %53 = vmatpush1.msra.mxu0 0.0
  %54 = vmatprep.subr.mxu0 0.0
  %55 = vmatpush1.msra.mxu0 0.0
  %56 = vmatprep.subr.mxu0 0.0
  %57 = vmatpush1.msra.mxu0 0.0
  %58 = vmatprep.subr.mxu0 0.0
  %59 = vmatpush1.msra.mxu0 0.0
  %60 = vmatprep.subr.mxu0 0.0
  %61 = vmatpush1.msra.mxu0 0.0
  %62 = vmatprep.subr.mxu0 0.0
  %63 = vmatpush1.msra.mxu0 0.0
  %64 = vmatprep.subr.mxu0 0.0
  %65 = vmatpush1.msra.mxu0 0.0
  %66 = vmatprep.subr.mxu0 0.0
  %67 = vmatpush1.msra.mxu0 0.0
  %68 = vmatprep.subr.mxu0 0.0
  %69 = vmatpush1.msra.mxu0 0.0
  %70 = vmatprep.subr.mxu0 0.0
  %71 = vmatpush1.msra.mxu0 0.0
  %72 = vmatprep.subr.mxu0 0.0
  %73 = vmatpush1.msra.mxu0 0.0
  %74 = vmatprep.subr.mxu0 0.0
  %75 = vmatpush1.msra.mxu0 0.0
  %76 = vmatprep.subr.mxu0 0.0
  %77 = vmatpush1.msra.mxu0 0.0
  %78 = vmatprep.subr.mxu0 0.0
  %79 = vmatpush1.msra.mxu0 0.0
  %80 = vmatprep.subr.mxu0 0.0
  %81 = vmatpush1.msra.mxu0 0.0
  %82 = vmatprep.subr.mxu0 0.0
  %83 = vmatpush1.msra.mxu0 0.0
  %84 = vmatprep.mubr.f32.mxu0 0.0
  %85 = vmatmul.mubr.f32.gmra.mrb[0].mxu0 %v18
  %v86 = vpop.f32.mrb[0].mxu0
  %v87 = vadd.f32 %v15, %v86
  %v88 = vpop.f32.mrb[0].mxu0
  %89 = vdwg.mxu0
  %v90 = vxor.u32 %v87, 2147483648
  %v91 = vmul.f32 %v90, 1.442695
  %v92 = vpow.pop %v91
  %v93 = vadd.f32 %v92, 1.0
  %v94 = vrcp.pop %v93
  %v95 = vmul.f32 1.0, %v94
  %v96 = vtanh.pop %v87
  %v97 = vmul.f32 %v95, 0.0
  %99 = vrot.lane.b32.xlu0 %v96, 32
  %v100 = vpop.permute.xlu0 %99
  %v102 = vmul.f32 %v95, %v100
  %104 = vrot.lane.b32.xlu0 %v102, 32
  %v105 = vpop.permute.xlu0 %104
  %v107 = vadd.f32 %v97, %v105
  %v108 = vtanh.pop %v107
  %110 = vrot.lane.b32.xlu0 %v108, 32
  %v111 = vpop.permute.xlu0 %110
  %v113 = vmul.f32 %v95, %v111
  %115 = vrot.lane.b32.xlu0 %v113, 64
  %v116 = vpop.permute.xlu0 %115
  %vm118 = vcmask 123904
  %119 = vst.msk [vmem:[%s2] sm:$0x3] %vm118, %v116
  %s120 = scalar_lea.vmem %s2, 14
  %vm121 = vcmask 255104
  %122 = vst.msk [vmem:[%s120] sm:$0x3] %vm121, %v116
  %s123 = scalar_lea.vmem %s0, 2
  %v124 = vld [vmem:[%s123] sm:$0x3]
  %v125 = vsel %vm16, %v116, 0
  %127 = vmatprep.subr.mxu0 0.0
  %128 = vmatpush1.msra.mxu0 %v11
  %129 = vmatprep.subr.mxu0 0.0
  %130 = vmatpush1.msra.mxu0 %v12
  %131 = vmatprep.subr.mxu0 0.0
  %132 = vmatpush1.msra.mxu0 %v13
  %133 = vmatprep.subr.mxu0 0.0
  %134 = vmatpush1.msra.mxu0 %v14
  %135 = vmatprep.subr.mxu0 0.0
  %136 = vmatpush1.msra.mxu0 0.0
  %137 = vmatprep.subr.mxu0 0.0
  %138 = vmatpush1.msra.mxu0 0.0
  %139 = vmatprep.subr.mxu0 0.0
  %140 = vmatpush1.msra.mxu0 0.0
  %141 = vmatprep.subr.mxu0 0.0
  %142 = vmatpush1.msra.mxu0 0.0
  %143 = vmatprep.subr.mxu0 0.0
  %144 = vmatpush1.msra.mxu0 0.0
  %145 = vmatprep.subr.mxu0 0.0
  %146 = vmatpush1.msra.mxu0 0.0
  %147 = vmatprep.subr.mxu0 0.0
  %148 = vmatpush1.msra.mxu0 0.0
  %149 = vmatprep.subr.mxu0 0.0
  %150 = vmatpush1.msra.mxu0 0.0
  %151 = vmatprep.subr.mxu0 0.0
  %152 = vmatpush1.msra.mxu0 0.0
  %153 = vmatprep.subr.mxu0 0.0
  %154 = vmatpush1.msra.mxu0 0.0
  %155 = vmatprep.subr.mxu0 0.0
  %156 = vmatpush1.msra.mxu0 0.0
  %157 = vmatprep.subr.mxu0 0.0
  %158 = vmatpush1.msra.mxu0 0.0
  %159 = vmatprep.subr.mxu0 0.0
  %160 = vmatpush1.msra.mxu0 0.0
  %161 = vmatprep.subr.mxu0 0.0
  %162 = vmatpush1.msra.mxu0 0.0
  %163 = vmatprep.subr.mxu0 0.0
  %164 = vmatpush1.msra.mxu0 0.0
  %165 = vmatprep.subr.mxu0 0.0
  %166 = vmatpush1.msra.mxu0 0.0
  %167 = vmatprep.subr.mxu0 0.0
  %168 = vmatpush1.msra.mxu0 0.0
  %169 = vmatprep.subr.mxu0 0.0
  %170 = vmatpush1.msra.mxu0 0.0
  %171 = vmatprep.subr.mxu0 0.0
  %172 = vmatpush1.msra.mxu0 0.0
  %173 = vmatprep.subr.mxu0 0.0
  %174 = vmatpush1.msra.mxu0 0.0
  %175 = vmatprep.subr.mxu0 0.0
  %176 = vmatpush1.msra.mxu0 0.0
  %177 = vmatprep.subr.mxu0 0.0
  %178 = vmatpush1.msra.mxu0 0.0
  %179 = vmatprep.subr.mxu0 0.0
  %180 = vmatpush1.msra.mxu0 0.0
  %181 = vmatprep.subr.mxu0 0.0
  %182 = vmatpush1.msra.mxu0 0.0
  %183 = vmatprep.subr.mxu0 0.0
  %184 = vmatpush1.msra.mxu0 0.0
  %185 = vmatprep.subr.mxu0 0.0
  %186 = vmatpush1.msra.mxu0 0.0
  %187 = vmatprep.subr.mxu0 0.0
  %188 = vmatpush1.msra.mxu0 0.0
  %189 = vmatprep.subr.mxu0 0.0
  %190 = vmatpush1.msra.mxu0 0.0
  %191 = vmatprep.mubr.f32.mxu0 0.0
  %192 = vmatmul.mubr.f32.gmra.mrb[0].mxu0 %v125
  %v193 = vpop.f32.mrb[0].mxu0
  %v194 = vadd.f32 %v124, %v193
  %v195 = vpop.f32.mrb[0].mxu0
  %196 = vdwg.mxu0
  %v197 = vxor.u32 %v194, 2147483648
  %v198 = vmul.f32 %v197, 1.442695
  %v199 = vpow.pop %v198
  %v200 = vadd.f32 %v199, 1.0
  %v201 = vrcp.pop %v200
  %v202 = vmul.f32 1.0, %v201
  %v203 = vtanh.pop %v194
  %v204 = vmul.f32 %v202, %v107
  %206 = vrot.lane.b32.xlu0 %v203, 32
  %v207 = vpop.permute.xlu0 %206
  %v209 = vmul.f32 %v202, %v207
  %211 = vrot.lane.b32.xlu0 %v209, 32
  %v212 = vpop.permute.xlu0 %211
  %v214 = vadd.f32 %v204, %v212
  %v215 = vtanh.pop %v214
  %217 = vrot.lane.b32.xlu0 %v215, 32
  %v218 = vpop.permute.xlu0 %217
  %v220 = vmul.f32 %v202, %v218
  %222 = vrot.lane.b32.xlu0 %v220, 64
  %v223 = vpop.permute.xlu0 %222
  %s225 = scalar_lea.vmem %s2, 2
  %226 = vst.msk [vmem:[%s225] sm:$0x3] %vm118, %v223
  %s227 = scalar_lea.vmem %s2, 12
  %228 = vst.msk [vmem:[%s227] sm:$0x3] %vm121, %v223
  %s229 = scalar_lea.vmem %s0, 4
  %v230 = vld [vmem:[%s229] sm:$0x3]
  %v231 = vsel %vm16, %v223, 0
  %233 = vmatprep.subr.mxu0 0.0
  %234 = vmatpush1.msra.mxu0 %v11
  %235 = vmatprep.subr.mxu0 0.0
  %236 = vmatpush1.msra.mxu0 %v12
  %237 = vmatprep.subr.mxu0 0.0
  %238 = vmatpush1.msra.mxu0 %v13
  %239 = vmatprep.subr.mxu0 0.0
  %240 = vmatpush1.msra.mxu0 %v14
  %241 = vmatprep.subr.mxu0 0.0
  %242 = vmatpush1.msra.mxu0 0.0
  %243 = vmatprep.subr.mxu0 0.0
  %244 = vmatpush1.msra.mxu0 0.0
  %245 = vmatprep.subr.mxu0 0.0
  %246 = vmatpush1.msra.mxu0 0.0
  %247 = vmatprep.subr.mxu0 0.0
  %248 = vmatpush1.msra.mxu0 0.0
  %249 = vmatprep.subr.mxu0 0.0
  %250 = vmatpush1.msra.mxu0 0.0
  %251 = vmatprep.subr.mxu0 0.0
  %252 = vmatpush1.msra.mxu0 0.0
  %253 = vmatprep.subr.mxu0 0.0
  %254 = vmatpush1.msra.mxu0 0.0
  %255 = vmatprep.subr.mxu0 0.0
  %256 = vmatpush1.msra.mxu0 0.0
  %257 = vmatprep.subr.mxu0 0.0
  %258 = vmatpush1.msra.mxu0 0.0
  %259 = vmatprep.subr.mxu0 0.0
  %260 = vmatpush1.msra.mxu0 0.0
  %261 = vmatprep.subr.mxu0 0.0
  %262 = vmatpush1.msra.mxu0 0.0
  %263 = vmatprep.subr.mxu0 0.0
  %264 = vmatpush1.msra.mxu0 0.0
  %265 = vmatprep.subr.mxu0 0.0
  %266 = vmatpush1.msra.mxu0 0.0
  %267 = vmatprep.subr.mxu0 0.0
  %268 = vmatpush1.msra.mxu0 0.0
  %269 = vmatprep.subr.mxu0 0.0
  %270 = vmatpush1.msra.mxu0 0.0
  %271 = vmatprep.subr.mxu0 0.0
  %272 = vmatpush1.msra.mxu0 0.0
  %273 = vmatprep.subr.mxu0 0.0
  %274 = vmatpush1.msra.mxu0 0.0
  %275 = vmatprep.subr.mxu0 0.0
  %276 = vmatpush1.msra.mxu0 0.0
  %277 = vmatprep.subr.mxu0 0.0
  %278 = vmatpush1.msra.mxu0 0.0
  %279 = vmatprep.subr.mxu0 0.0
  %280 = vmatpush1.msra.mxu0 0.0
  %281 = vmatprep.subr.mxu0 0.0
  %282 = vmatpush1.msra.mxu0 0.0
  %283 = vmatprep.subr.mxu0 0.0
  %284 = vmatpush1.msra.mxu0 0.0
  %285 = vmatprep.subr.mxu0 0.0
  %286 = vmatpush1.msra.mxu0 0.0
  %287 = vmatprep.subr.mxu0 0.0
  %288 = vmatpush1.msra.mxu0 0.0
  %289 = vmatprep.subr.mxu0 0.0
  %290 = vmatpush1.msra.mxu0 0.0
  %291 = vmatprep.subr.mxu0 0.0
  %292 = vmatpush1.msra.mxu0 0.0
  %293 = vmatprep.subr.mxu0 0.0
  %294 = vmatpush1.msra.mxu0 0.0
  %295 = vmatprep.subr.mxu0 0.0
  %296 = vmatpush1.msra.mxu0 0.0
  %297 = vmatprep.mubr.f32.mxu0 0.0
  %298 = vmatmul.mubr.f32.gmra.mrb[0].mxu0 %v231
  %v299 = vpop.f32.mrb[0].mxu0
  %v300 = vadd.f32 %v230, %v299
  %v301 = vpop.f32.mrb[0].mxu0
  %302 = vdwg.mxu0
  %v303 = vxor.u32 %v300, 2147483648
  %v304 = vmul.f32 %v303, 1.442695
  %v305 = vpow.pop %v304
  %v306 = vadd.f32 %v305, 1.0
  %v307 = vrcp.pop %v306
  %v308 = vmul.f32 1.0, %v307
  %v309 = vtanh.pop %v300
  %v310 = vmul.f32 %v308, %v214
  %312 = vrot.lane.b32.xlu0 %v309, 32
  %v313 = vpop.permute.xlu0 %312
  %v315 = vmul.f32 %v308, %v313
  %317 = vrot.lane.b32.xlu0 %v315, 32
  %v318 = vpop.permute.xlu0 %317
  %v320 = vadd.f32 %v310, %v318
  %v321 = vtanh.pop %v320
  %323 = vrot.lane.b32.xlu0 %v321, 32
  %v324 = vpop.permute.xlu0 %323
  %v326 = vmul.f32 %v308, %v324
  %328 = vrot.lane.b32.xlu0 %v326, 64
  %v329 = vpop.permute.xlu0 %328
  %s331 = scalar_lea.vmem %s2, 4
  %332 = vst.msk [vmem:[%s331] sm:$0x3] %vm118, %v329
  %s333 = scalar_lea.vmem %s2, 10
  %334 = vst.msk [vmem:[%s333] sm:$0x3] %vm121, %v329
  %s335 = scalar_lea.vmem %s0, 6
  %v336 = vld [vmem:[%s335] sm:$0x3]
  %v337 = vsel %vm16, %v329, 0
  %339 = vmatprep.subr.mxu0 0.0
  %340 = vmatpush1.msra.mxu0 %v11
  %341 = vmatprep.subr.mxu0 0.0
  %342 = vmatpush1.msra.mxu0 %v12
  %343 = vmatprep.subr.mxu0 0.0
  %344 = vmatpush1.msra.mxu0 %v13
  %345 = vmatprep.subr.mxu0 0.0
  %346 = vmatpush1.msra.mxu0 %v14
  %347 = vmatprep.subr.mxu0 0.0
  %348 = vmatpush1.msra.mxu0 0.0
  %349 = vmatprep.subr.mxu0 0.0
  %350 = vmatpush1.msra.mxu0 0.0
  %351 = vmatprep.subr.mxu0 0.0
  %352 = vmatpush1.msra.mxu0 0.0
  %353 = vmatprep.subr.mxu0 0.0
  %354 = vmatpush1.msra.mxu0 0.0
  %355 = vmatprep.subr.mxu0 0.0
  %356 = vmatpush1.msra.mxu0 0.0
  %357 = vmatprep.subr.mxu0 0.0
  %358 = vmatpush1.msra.mxu0 0.0
  %359 = vmatprep.subr.mxu0 0.0
  %360 = vmatpush1.msra.mxu0 0.0
  %361 = vmatprep.subr.mxu0 0.0
  %362 = vmatpush1.msra.mxu0 0.0
  %363 = vmatprep.subr.mxu0 0.0
  %364 = vmatpush1.msra.mxu0 0.0
  %365 = vmatprep.subr.mxu0 0.0
  %366 = vmatpush1.msra.mxu0 0.0
  %367 = vmatprep.subr.mxu0 0.0
  %368 = vmatpush1.msra.mxu0 0.0
  %369 = vmatprep.subr.mxu0 0.0
  %370 = vmatpush1.msra.mxu0 0.0
  %371 = vmatprep.subr.mxu0 0.0
  %372 = vmatpush1.msra.mxu0 0.0
  %373 = vmatprep.subr.mxu0 0.0
  %374 = vmatpush1.msra.mxu0 0.0
  %375 = vmatprep.subr.mxu0 0.0
  %376 = vmatpush1.msra.mxu0 0.0
  %377 = vmatprep.subr.mxu0 0.0
  %378 = vmatpush1.msra.mxu0 0.0
  %379 = vmatprep.subr.mxu0 0.0
  %380 = vmatpush1.msra.mxu0 0.0
  %381 = vmatprep.subr.mxu0 0.0
  %382 = vmatpush1.msra.mxu0 0.0
  %383 = vmatprep.subr.mxu0 0.0
  %384 = vmatpush1.msra.mxu0 0.0
  %385 = vmatprep.subr.mxu0 0.0
  %386 = vmatpush1.msra.mxu0 0.0
  %387 = vmatprep.subr.mxu0 0.0
  %388 = vmatpush1.msra.mxu0 0.0
  %389 = vmatprep.subr.mxu0 0.0
  %390 = vmatpush1.msra.mxu0 0.0
  %391 = vmatprep.subr.mxu0 0.0
  %392 = vmatpush1.msra.mxu0 0.0
  %393 = vmatprep.subr.mxu0 0.0
  %394 = vmatpush1.msra.mxu0 0.0
  %395 = vmatprep.subr.mxu0 0.0
  %396 = vmatpush1.msra.mxu0 0.0
  %397 = vmatprep.subr.mxu0 0.0
  %398 = vmatpush1.msra.mxu0 0.0
  %399 = vmatprep.subr.mxu0 0.0
  %400 = vmatpush1.msra.mxu0 0.0
  %401 = vmatprep.subr.mxu0 0.0
  %402 = vmatpush1.msra.mxu0 0.0
  %403 = vmatprep.mubr.f32.mxu0 0.0
  %404 = vmatmul.mubr.f32.gmra.mrb[0].mxu0 %v337
  %v405 = vpop.f32.mrb[0].mxu0
  %v406 = vadd.f32 %v336, %v405
  %v407 = vpop.f32.mrb[0].mxu0
  %408 = vdwg.mxu0
  %v409 = vxor.u32 %v406, 2147483648
  %v410 = vmul.f32 %v409, 1.442695
  %v411 = vpow.pop %v410
  %v412 = vadd.f32 %v411, 1.0
  %v413 = vrcp.pop %v412
  %v414 = vmul.f32 1.0, %v413
  %v415 = vtanh.pop %v406
  %v416 = vmul.f32 %v414, %v320
  %418 = vrot.lane.b32.xlu0 %v415, 32
  %v419 = vpop.permute.xlu0 %418
  %v421 = vmul.f32 %v414, %v419
  %423 = vrot.lane.b32.xlu0 %v421, 32
  %v424 = vpop.permute.xlu0 %423
  %v426 = vadd.f32 %v416, %v424
  %v427 = vtanh.pop %v426
  %429 = vrot.lane.b32.xlu0 %v427, 32
  %v430 = vpop.permute.xlu0 %429
  %v432 = vmul.f32 %v414, %v430
  %434 = vrot.lane.b32.xlu0 %v432, 64
  %v435 = vpop.permute.xlu0 %434
  %s437 = scalar_lea.vmem %s2, 6
  %438 = vst.msk [vmem:[%s437] sm:$0x3] %vm118, %v435
  %s439 = scalar_lea.vmem %s2, 8
  %440 = vst.msk [vmem:[%s439] sm:$0x3] %vm121, %v435
  %s441 = scalar_lea.vmem %s0, 8
  %v442 = vld [vmem:[%s441] sm:$0x3]
  %v443 = vsel %vm16, %v435, 0
  %445 = vmatprep.subr.mxu0 0.0
  %446 = vmatpush1.msra.mxu0 %v11
  %447 = vmatprep.subr.mxu0 0.0
  %448 = vmatpush1.msra.mxu0 %v12
  %449 = vmatprep.subr.mxu0 0.0
  %450 = vmatpush1.msra.mxu0 %v13
  %451 = vmatprep.subr.mxu0 0.0
  %452 = vmatpush1.msra.mxu0 %v14
  %453 = vmatprep.subr.mxu0 0.0
  %454 = vmatpush1.msra.mxu0 0.0
  %455 = vmatprep.subr.mxu0 0.0
  %456 = vmatpush1.msra.mxu0 0.0
  %457 = vmatprep.subr.mxu0 0.0
  %458 = vmatpush1.msra.mxu0 0.0
  %459 = vmatprep.subr.mxu0 0.0
  %460 = vmatpush1.msra.mxu0 0.0
  %461 = vmatprep.subr.mxu0 0.0
  %462 = vmatpush1.msra.mxu0 0.0
  %463 = vmatprep.subr.mxu0 0.0
  %464 = vmatpush1.msra.mxu0 0.0
  %465 = vmatprep.subr.mxu0 0.0
  %466 = vmatpush1.msra.mxu0 0.0
  %467 = vmatprep.subr.mxu0 0.0
  %468 = vmatpush1.msra.mxu0 0.0
  %469 = vmatprep.subr.mxu0 0.0
  %470 = vmatpush1.msra.mxu0 0.0
  %471 = vmatprep.subr.mxu0 0.0
  %472 = vmatpush1.msra.mxu0 0.0
  %473 = vmatprep.subr.mxu0 0.0
  %474 = vmatpush1.msra.mxu0 0.0
  %475 = vmatprep.subr.mxu0 0.0
  %476 = vmatpush1.msra.mxu0 0.0
  %477 = vmatprep.subr.mxu0 0.0
  %478 = vmatpush1.msra.mxu0 0.0
  %479 = vmatprep.subr.mxu0 0.0
  %480 = vmatpush1.msra.mxu0 0.0
  %481 = vmatprep.subr.mxu0 0.0
  %482 = vmatpush1.msra.mxu0 0.0
  %483 = vmatprep.subr.mxu0 0.0
  %484 = vmatpush1.msra.mxu0 0.0
  %485 = vmatprep.subr.mxu0 0.0
  %486 = vmatpush1.msra.mxu0 0.0
  %487 = vmatprep.subr.mxu0 0.0
  %488 = vmatpush1.msra.mxu0 0.0
  %489 = vmatprep.subr.mxu0 0.0
  %490 = vmatpush1.msra.mxu0 0.0
  %491 = vmatprep.subr.mxu0 0.0
  %492 = vmatpush1.msra.mxu0 0.0
  %493 = vmatprep.subr.mxu0 0.0
  %494 = vmatpush1.msra.mxu0 0.0
  %495 = vmatprep.subr.mxu0 0.0
  %496 = vmatpush1.msra.mxu0 0.0
  %497 = vmatprep.subr.mxu0 0.0
  %498 = vmatpush1.msra.mxu0 0.0
  %499 = vmatprep.subr.mxu0 0.0
  %500 = vmatpush1.msra.mxu0 0.0
  %501 = vmatprep.subr.mxu0 0.0
  %502 = vmatpush1.msra.mxu0 0.0
  %503 = vmatprep.subr.mxu0 0.0
  %504 = vmatpush1.msra.mxu0 0.0
  %505 = vmatprep.subr.mxu0 0.0
  %506 = vmatpush1.msra.mxu0 0.0
  %507 = vmatprep.subr.mxu0 0.0
  %508 = vmatpush1.msra.mxu0 0.0
  %509 = vmatprep.mubr.f32.mxu0 0.0
  %510 = vmatmul.mubr.f32.gmra.mrb[0].mxu0 %v443
  %v511 = vpop.f32.mrb[0].mxu0
  %v512 = vadd.f32 %v442, %v511
  %v513 = vpop.f32.mrb[0].mxu0
  %514 = vdwg.mxu0
  %v515 = vxor.u32 %v512, 2147483648
  %v516 = vmul.f32 %v515, 1.442695
  %v517 = vpow.pop %v516
  %v518 = vadd.f32 %v517, 1.0
  %v519 = vrcp.pop %v518
  %v520 = vmul.f32 1.0, %v519
  %v521 = vtanh.pop %v512
  %v522 = vmul.f32 %v520, %v426
  %524 = vrot.lane.b32.xlu0 %v521, 32
  %v525 = vpop.permute.xlu0 %524
  %v527 = vmul.f32 %v520, %v525
  %529 = vrot.lane.b32.xlu0 %v527, 32
  %v530 = vpop.permute.xlu0 %529
  %v532 = vadd.f32 %v522, %v530
  %v533 = vtanh.pop %v532
  %535 = vrot.lane.b32.xlu0 %v533, 32
  %v536 = vpop.permute.xlu0 %535
  %v538 = vmul.f32 %v520, %v536
  %540 = vrot.lane.b32.xlu0 %v538, 64
  %v541 = vpop.permute.xlu0 %540
  %543 = vst.msk [vmem:[%s439] sm:$0x3] %vm118, %v541
  %544 = vst.msk [vmem:[%s437] sm:$0x3] %vm121, %v541
  %s545 = scalar_lea.vmem %s0, 10
  %v546 = vld [vmem:[%s545] sm:$0x3]
  %v547 = vsel %vm16, %v541, 0
  %549 = vmatprep.subr.mxu0 0.0
  %550 = vmatpush1.msra.mxu0 %v11
  %551 = vmatprep.subr.mxu0 0.0
  %552 = vmatpush1.msra.mxu0 %v12
  %553 = vmatprep.subr.mxu0 0.0
  %554 = vmatpush1.msra.mxu0 %v13
  %555 = vmatprep.subr.mxu0 0.0
  %556 = vmatpush1.msra.mxu0 %v14
  %557 = vmatprep.subr.mxu0 0.0
  %558 = vmatpush1.msra.mxu0 0.0
  %559 = vmatprep.subr.mxu0 0.0
  %560 = vmatpush1.msra.mxu0 0.0
  %561 = vmatprep.subr.mxu0 0.0
  %562 = vmatpush1.msra.mxu0 0.0
  %563 = vmatprep.subr.mxu0 0.0
  %564 = vmatpush1.msra.mxu0 0.0
  %565 = vmatprep.subr.mxu0 0.0
  %566 = vmatpush1.msra.mxu0 0.0
  %567 = vmatprep.subr.mxu0 0.0
  %568 = vmatpush1.msra.mxu0 0.0
  %569 = vmatprep.subr.mxu0 0.0
  %570 = vmatpush1.msra.mxu0 0.0
  %571 = vmatprep.subr.mxu0 0.0
  %572 = vmatpush1.msra.mxu0 0.0
  %573 = vmatprep.subr.mxu0 0.0
  %574 = vmatpush1.msra.mxu0 0.0
  %575 = vmatprep.subr.mxu0 0.0
  %576 = vmatpush1.msra.mxu0 0.0
  %577 = vmatprep.subr.mxu0 0.0
  %578 = vmatpush1.msra.mxu0 0.0
  %579 = vmatprep.subr.mxu0 0.0
  %580 = vmatpush1.msra.mxu0 0.0
  %581 = vmatprep.subr.mxu0 0.0
  %582 = vmatpush1.msra.mxu0 0.0
  %583 = vmatprep.subr.mxu0 0.0
  %584 = vmatpush1.msra.mxu0 0.0
  %585 = vmatprep.subr.mxu0 0.0
  %586 = vmatpush1.msra.mxu0 0.0
  %587 = vmatprep.subr.mxu0 0.0
  %588 = vmatpush1.msra.mxu0 0.0
  %589 = vmatprep.subr.mxu0 0.0
  %590 = vmatpush1.msra.mxu0 0.0
  %591 = vmatprep.subr.mxu0 0.0
  %592 = vmatpush1.msra.mxu0 0.0
  %593 = vmatprep.subr.mxu0 0.0
  %594 = vmatpush1.msra.mxu0 0.0
  %595 = vmatprep.subr.mxu0 0.0
  %596 = vmatpush1.msra.mxu0 0.0
  %597 = vmatprep.subr.mxu0 0.0
  %598 = vmatpush1.msra.mxu0 0.0
  %599 = vmatprep.subr.mxu0 0.0
  %600 = vmatpush1.msra.mxu0 0.0
  %601 = vmatprep.subr.mxu0 0.0
  %602 = vmatpush1.msra.mxu0 0.0
  %603 = vmatprep.subr.mxu0 0.0
  %604 = vmatpush1.msra.mxu0 0.0
  %605 = vmatprep.subr.mxu0 0.0
  %606 = vmatpush1.msra.mxu0 0.0
  %607 = vmatprep.subr.mxu0 0.0
  %608 = vmatpush1.msra.mxu0 0.0
  %609 = vmatprep.subr.mxu0 0.0
  %610 = vmatpush1.msra.mxu0 0.0
  %611 = vmatprep.subr.mxu0 0.0
  %612 = vmatpush1.msra.mxu0 0.0
  %613 = vmatprep.mubr.f32.mxu0 0.0
  %614 = vmatmul.mubr.f32.gmra.mrb[0].mxu0 %v547
  %v615 = vpop.f32.mrb[0].mxu0
  %v616 = vadd.f32 %v546, %v615
  %v617 = vpop.f32.mrb[0].mxu0
  %618 = vdwg.mxu0
  %v619 = vxor.u32 %v616, 2147483648
  %v620 = vmul.f32 %v619, 1.442695
  %v621 = vpow.pop %v620
  %v622 = vadd.f32 %v621, 1.0
  %v623 = vrcp.pop %v622
  %v624 = vmul.f32 1.0, %v623
  %v625 = vtanh.pop %v616
  %v626 = vmul.f32 %v624, %v532
  %628 = vrot.lane.b32.xlu0 %v625, 32
  %v629 = vpop.permute.xlu0 %628
  %v631 = vmul.f32 %v624, %v629
  %633 = vrot.lane.b32.xlu0 %v631, 32
  %v634 = vpop.permute.xlu0 %633
  %v636 = vadd.f32 %v626, %v634
  %v637 = vtanh.pop %v636
  %639 = vrot.lane.b32.xlu0 %v637, 32
  %v640 = vpop.permute.xlu0 %639
  %v642 = vmul.f32 %v624, %v640
  %644 = vrot.lane.b32.xlu0 %v642, 64
  %v645 = vpop.permute.xlu0 %644
  %647 = vst.msk [vmem:[%s333] sm:$0x3] %vm118, %v645
  %648 = vst.msk [vmem:[%s331] sm:$0x3] %vm121, %v645
  %s649 = scalar_lea.vmem %s0, 12
  %v650 = vld [vmem:[%s649] sm:$0x3]
  %v651 = vsel %vm16, %v645, 0
  %653 = vmatprep.subr.mxu0 0.0
  %654 = vmatpush1.msra.mxu0 %v11
  %655 = vmatprep.subr.mxu0 0.0
  %656 = vmatpush1.msra.mxu0 %v12
  %657 = vmatprep.subr.mxu0 0.0
  %658 = vmatpush1.msra.mxu0 %v13
  %659 = vmatprep.subr.mxu0 0.0
  %660 = vmatpush1.msra.mxu0 %v14
  %661 = vmatprep.subr.mxu0 0.0
  %662 = vmatpush1.msra.mxu0 0.0
  %663 = vmatprep.subr.mxu0 0.0
  %664 = vmatpush1.msra.mxu0 0.0
  %665 = vmatprep.subr.mxu0 0.0
  %666 = vmatpush1.msra.mxu0 0.0
  %667 = vmatprep.subr.mxu0 0.0
  %668 = vmatpush1.msra.mxu0 0.0
  %669 = vmatprep.subr.mxu0 0.0
  %670 = vmatpush1.msra.mxu0 0.0
  %671 = vmatprep.subr.mxu0 0.0
  %672 = vmatpush1.msra.mxu0 0.0
  %673 = vmatprep.subr.mxu0 0.0
  %674 = vmatpush1.msra.mxu0 0.0
  %675 = vmatprep.subr.mxu0 0.0
  %676 = vmatpush1.msra.mxu0 0.0
  %677 = vmatprep.subr.mxu0 0.0
  %678 = vmatpush1.msra.mxu0 0.0
  %679 = vmatprep.subr.mxu0 0.0
  %680 = vmatpush1.msra.mxu0 0.0
  %681 = vmatprep.subr.mxu0 0.0
  %682 = vmatpush1.msra.mxu0 0.0
  %683 = vmatprep.subr.mxu0 0.0
  %684 = vmatpush1.msra.mxu0 0.0
  %685 = vmatprep.subr.mxu0 0.0
  %686 = vmatpush1.msra.mxu0 0.0
  %687 = vmatprep.subr.mxu0 0.0
  %688 = vmatpush1.msra.mxu0 0.0
  %689 = vmatprep.subr.mxu0 0.0
  %690 = vmatpush1.msra.mxu0 0.0
  %691 = vmatprep.subr.mxu0 0.0
  %692 = vmatpush1.msra.mxu0 0.0
  %693 = vmatprep.subr.mxu0 0.0
  %694 = vmatpush1.msra.mxu0 0.0
  %695 = vmatprep.subr.mxu0 0.0
  %696 = vmatpush1.msra.mxu0 0.0
  %697 = vmatprep.subr.mxu0 0.0
  %698 = vmatpush1.msra.mxu0 0.0
  %699 = vmatprep.subr.mxu0 0.0
  %700 = vmatpush1.msra.mxu0 0.0
  %701 = vmatprep.subr.mxu0 0.0
  %702 = vmatpush1.msra.mxu0 0.0
  %703 = vmatprep.subr.mxu0 0.0
  %704 = vmatpush1.msra.mxu0 0.0
  %705 = vmatprep.subr.mxu0 0.0
  %706 = vmatpush1.msra.mxu0 0.0
  %707 = vmatprep.subr.mxu0 0.0
  %708 = vmatpush1.msra.mxu0 0.0
  %709 = vmatprep.subr.mxu0 0.0
  %710 = vmatpush1.msra.mxu0 0.0
  %711 = vmatprep.subr.mxu0 0.0
  %712 = vmatpush1.msra.mxu0 0.0
  %713 = vmatprep.subr.mxu0 0.0
  %714 = vmatpush1.msra.mxu0 0.0
  %715 = vmatprep.subr.mxu0 0.0
  %716 = vmatpush1.msra.mxu0 0.0
  %717 = vmatprep.mubr.f32.mxu0 0.0
  %718 = vmatmul.mubr.f32.gmra.mrb[0].mxu0 %v651
  %v719 = vpop.f32.mrb[0].mxu0
  %v720 = vadd.f32 %v650, %v719
  %v721 = vpop.f32.mrb[0].mxu0
  %722 = vdwg.mxu0
  %v723 = vxor.u32 %v720, 2147483648
  %v724 = vmul.f32 %v723, 1.442695
  %v725 = vpow.pop %v724
  %v726 = vadd.f32 %v725, 1.0
  %v727 = vrcp.pop %v726
  %v728 = vmul.f32 1.0, %v727
  %v729 = vtanh.pop %v720
  %v730 = vmul.f32 %v728, %v636
  %732 = vrot.lane.b32.xlu0 %v729, 32
  %v733 = vpop.permute.xlu0 %732
  %v735 = vmul.f32 %v728, %v733
  %737 = vrot.lane.b32.xlu0 %v735, 32
  %v738 = vpop.permute.xlu0 %737
  %v740 = vadd.f32 %v730, %v738
  %v741 = vtanh.pop %v740
  %743 = vrot.lane.b32.xlu0 %v741, 32
  %v744 = vpop.permute.xlu0 %743
  %v746 = vmul.f32 %v728, %v744
  %748 = vrot.lane.b32.xlu0 %v746, 64
  %v749 = vpop.permute.xlu0 %748
  %751 = vst.msk [vmem:[%s227] sm:$0x3] %vm118, %v749
  %752 = vst.msk [vmem:[%s225] sm:$0x3] %vm121, %v749
  %s753 = scalar_lea.vmem %s0, 14
  %v754 = vld [vmem:[%s753] sm:$0x3]
  %v755 = vsel %vm16, %v749, 0
  %757 = vmatprep.subr.mxu0 0.0
  %758 = vmatpush1.msra.mxu0 %v11
  %759 = vmatprep.subr.mxu0 0.0
  %760 = vmatpush1.msra.mxu0 %v12
  %761 = vmatprep.subr.mxu0 0.0
  %762 = vmatpush1.msra.mxu0 %v13
  %763 = vmatprep.subr.mxu0 0.0
  %764 = vmatpush1.msra.mxu0 %v14
  %765 = vmatprep.subr.mxu0 0.0
  %766 = vmatpush1.msra.mxu0 0.0
  %767 = vmatprep.subr.mxu0 0.0
  %768 = vmatpush1.msra.mxu0 0.0
  %769 = vmatprep.subr.mxu0 0.0
  %770 = vmatpush1.msra.mxu0 0.0
  %771 = vmatprep.subr.mxu0 0.0
  %772 = vmatpush1.msra.mxu0 0.0
  %773 = vmatprep.subr.mxu0 0.0
  %774 = vmatpush1.msra.mxu0 0.0
  %775 = vmatprep.subr.mxu0 0.0
  %776 = vmatpush1.msra.mxu0 0.0
  %777 = vmatprep.subr.mxu0 0.0
  %778 = vmatpush1.msra.mxu0 0.0
  %779 = vmatprep.subr.mxu0 0.0
  %780 = vmatpush1.msra.mxu0 0.0
  %781 = vmatprep.subr.mxu0 0.0
  %782 = vmatpush1.msra.mxu0 0.0
  %783 = vmatprep.subr.mxu0 0.0
  %784 = vmatpush1.msra.mxu0 0.0
  %785 = vmatprep.subr.mxu0 0.0
  %786 = vmatpush1.msra.mxu0 0.0
  %787 = vmatprep.subr.mxu0 0.0
  %788 = vmatpush1.msra.mxu0 0.0
  %789 = vmatprep.subr.mxu0 0.0
  %790 = vmatpush1.msra.mxu0 0.0
  %791 = vmatprep.subr.mxu0 0.0
  %792 = vmatpush1.msra.mxu0 0.0
  %793 = vmatprep.subr.mxu0 0.0
  %794 = vmatpush1.msra.mxu0 0.0
  %795 = vmatprep.subr.mxu0 0.0
  %796 = vmatpush1.msra.mxu0 0.0
  %797 = vmatprep.subr.mxu0 0.0
  %798 = vmatpush1.msra.mxu0 0.0
  %799 = vmatprep.subr.mxu0 0.0
  %800 = vmatpush1.msra.mxu0 0.0
  %801 = vmatprep.subr.mxu0 0.0
  %802 = vmatpush1.msra.mxu0 0.0
  %803 = vmatprep.subr.mxu0 0.0
  %804 = vmatpush1.msra.mxu0 0.0
  %805 = vmatprep.subr.mxu0 0.0
  %806 = vmatpush1.msra.mxu0 0.0
  %807 = vmatprep.subr.mxu0 0.0
  %808 = vmatpush1.msra.mxu0 0.0
  %809 = vmatprep.subr.mxu0 0.0
  %810 = vmatpush1.msra.mxu0 0.0
  %811 = vmatprep.subr.mxu0 0.0
  %812 = vmatpush1.msra.mxu0 0.0
  %813 = vmatprep.subr.mxu0 0.0
  %814 = vmatpush1.msra.mxu0 0.0
  %815 = vmatprep.subr.mxu0 0.0
  %816 = vmatpush1.msra.mxu0 0.0
  %817 = vmatprep.subr.mxu0 0.0
  %818 = vmatpush1.msra.mxu0 0.0
  %819 = vmatprep.subr.mxu0 0.0
  %820 = vmatpush1.msra.mxu0 0.0
  %821 = vmatprep.mubr.f32.mxu0 0.0
  %822 = vmatmul.mubr.f32.gmra.mrb[0].mxu0 %v755
  %v823 = vpop.f32.mrb[0].mxu0
  %v824 = vadd.f32 %v754, %v823
  %v825 = vpop.f32.mrb[0].mxu0
  %826 = vdwg.mxu0
  %v827 = vxor.u32 %v824, 2147483648
  %v828 = vmul.f32 %v827, 1.442695
  %v829 = vpow.pop %v828
  %v830 = vadd.f32 %v829, 1.0
  %v831 = vrcp.pop %v830
  %v832 = vmul.f32 1.0, %v831
  %v833 = vtanh.pop %v824
  %v834 = vmul.f32 %v832, %v740
  %836 = vrot.lane.b32.xlu0 %v833, 32
  %v837 = vpop.permute.xlu0 %836
  %v839 = vmul.f32 %v832, %v837
  %841 = vrot.lane.b32.xlu0 %v839, 32
  %v842 = vpop.permute.xlu0 %841
  %v844 = vadd.f32 %v834, %v842
  %v845 = vtanh.pop %v844
  %847 = vrot.lane.b32.xlu0 %v845, 32
  %v848 = vpop.permute.xlu0 %847
  %v850 = vmul.f32 %v832, %v848
  %852 = vrot.lane.b32.xlu0 %v850, 64
  %v853 = vpop.permute.xlu0 %852
  %855 = vst.msk [vmem:[%s120] sm:$0x3] %vm118, %v853
  %856 = vst.msk [vmem:[%s2] sm:$0x3] %vm121, %v853
  // Predicated region
  $region10: #{subj_lstm_forward.1} parent=0 // pred_check
    _
  $region11: #{subj_lstm_forward.1} parent=0 // pred_check_branch
    %858 = sbr.rel (0) target = $region13
  $region12: #{subj_lstm_forward.1} parent=0 // pred_region
    _
  $region13: #{subj_lstm_forward.1} parent=0 // pred_fallthru
    _
  // Predicated region
  $region14: #{subj_lstm_forward.1} parent=0 // pred_check
    _
  $region15: #{subj_lstm_forward.1} parent=0 // pred_check_branch
    %860 = sbr.rel (0) target = $region17
  $region16: #{subj_lstm_forward.1} parent=0 // pred_region
    _
  $region17: #{subj_lstm_forward.1} parent=0 // pred_fallthru
    _

</llo_original>
